<compile_context>
chip_gen: v6e
topology: v6e:2x2x1
jax: 0.10.0
libtpu: 0.0.40
codegen_flags: <defaults>
</compile_context>

<pallas_src>
import functools

import jax
import jax.numpy as jnp
from jax.experimental import pallas as pl
from jax.experimental.pallas import tpu as pltpu

_LANE = 512            # lane width: multiple of 128 -> lane-dense, unmasked stores
_MAX_BLOCK_ROWS = 512  # 512 x 512 x 4B = 1 MiB per f32 block; double-buffered
                       # in + noise + out stays ~6 MiB VMEM (safe on v5e/v6e/v7x)


def _round_up(a, b):
    return ((a + b - 1) // b) * b


def _add_noise_kernel(x_ref, n_ref, o_ref, *, stddev):
    # Fused scale + add on the VPU; noise is already standard-normal.
    s = jnp.asarray(stddev, dtype=x_ref.dtype)
    o_ref[...] = x_ref[...] + s * n_ref[...]


def gaussian_noise(x, *, stddev, key):
    """Returns x + N(0, stddev^2) noise (same shape/dtype), via a Pallas kernel."""
    orig_shape = x.shape
    dtype = x.dtype
    n = x.size

    # Flatten to a lane-dense (rows, _LANE) slab, padded so blocks tile evenly.
    rows = max(8, _round_up(pl.cdiv(n, _LANE), 8))
    block_rows = min(_MAX_BLOCK_ROWS, rows)
    rows = _round_up(rows, block_rows)
    padded = rows * _LANE

    x_flat = jnp.ravel(x)
    if padded != n:
        x_flat = jnp.pad(x_flat, (0, padded - n))
    x2 = x_flat.reshape(rows, _LANE)

    # Standard-normal noise for the whole (padded) slab; scaled in-kernel.
    noise2 = jax.random.normal(key, (rows, _LANE), dtype=dtype)

    grid = (rows // block_rows,)
    itemsize = jnp.dtype(dtype).itemsize

    out2 = pl.pallas_call(
        functools.partial(_add_noise_kernel, stddev=stddev),
        out_shape=jax.ShapeDtypeStruct((rows, _LANE), dtype),
        grid=grid,
        in_specs=[
            pl.BlockSpec((block_rows, _LANE), lambda i: (i, 0)),
            pl.BlockSpec((block_rows, _LANE), lambda i: (i, 0)),
        ],
        out_specs=pl.BlockSpec((block_rows, _LANE), lambda i: (i, 0)),
        input_output_aliases={0: 0},  # write result over the x slab in place
        compiler_params=pltpu.CompilerParams(
            dimension_semantics=("parallel",)),
        cost_estimate=pl.CostEstimate(
            flops=2 * padded,
            transcendentals=0,
            bytes_accessed=3 * padded * itemsize),
    )(x2, noise2)

    return out2.reshape(-1)[:n].reshape(orig_shape)


if __name__ == "__main__":
    key = jax.random.PRNGKey(0)
    B, C, H, W = 2, 4, 16, 16
    kx, knoise = jax.random.split(key)
    x = jax.random.normal(kx, (B, C, H, W), dtype=jnp.float32)

    stddev = 0.1
    y = gaussian_noise(x, stddev=stddev, key=knoise)
    y = jax.block_until_ready(y)

    # Sanity checks: shape/dtype preserved; added noise is finite and has
    # roughly the requested scale (loose statistical bounds over 2048 samples).
    assert y.shape == x.shape and y.dtype == x.dtype
    diff = (y - x).ravel()
    assert bool(jnp.all(jnp.isfinite(diff)))
    assert abs(float(jnp.mean(diff))) < 0.05
    s = float(jnp.std(diff))
    assert 0.05 < s < 0.2, f"noise std {s} not near {stddev}"

    print("KERNEL_OK")
</pallas_src>

<mosaic_0001>
module attributes {stable_mosaic.version = 11 : i64} {
  func.func @_add_noise_kernel(%arg0: i32, %arg1: memref<8x512xf32, #tpu.memory_space<vmem>>, %arg2: memref<8x512xf32, #tpu.memory_space<vmem>>, %arg3: memref<8x512xf32, #tpu.memory_space<vmem>>) attributes {dimension_semantics = [#tpu.dimension_semantics<parallel>], iteration_bounds = array<i64: 1>, scalar_prefetch = 0 : i64, scratch_operands = 0 : i64, tpu.core_type = #tpu.core_type<tc>, window_params = [{transform_indices = @transform_0, window_bounds = array<i64: 8, 512>}, {transform_indices = @transform_1, window_bounds = array<i64: 8, 512>}, {transform_indices = @transform_2, window_bounds = array<i64: 8, 512>}]} {
    %c0 = arith.constant 0 : index
    %c0_0 = arith.constant 0 : index
    %0 = vector.load %arg1[%c0, %c0_0] : memref<8x512xf32, #tpu.memory_space<vmem>>, vector<8x512xf32>
    %c0_1 = arith.constant 0 : index
    %c0_2 = arith.constant 0 : index
    %1 = vector.load %arg2[%c0_1, %c0_2] : memref<8x512xf32, #tpu.memory_space<vmem>>, vector<8x512xf32>
    %cst = arith.constant 1.000000e-01 : f32
    %2 = vector.broadcast %cst : f32 to vector<8x512xf32>
    %3 = arith.mulf %2, %1 : vector<8x512xf32>
    %4 = arith.addf %0, %3 : vector<8x512xf32>
    %c0_3 = arith.constant 0 : index
    %c0_4 = arith.constant 0 : index
    %5 = vector.load %arg3[%c0_3, %c0_4] : memref<8x512xf32, #tpu.memory_space<vmem>>, vector<8x512xf32>
    tpu.vector_store %arg3[%c0_3, %c0_4], %4 {strides = array<i32>} : memref<8x512xf32, #tpu.memory_space<vmem>>, vector<8x512xf32>,
    return
  }
  func.func @transform_0(%arg0: i32) -> (i32, i32) {
    %c0_i32 = arith.constant 0 : i32
    %c0_i32_0 = arith.constant 0 : i32
    return %arg0, %c0_i32 : i32, i32
  }
  func.func @transform_1(%arg0: i32) -> (i32, i32) {
    %c0_i32 = arith.constant 0 : i32
    %c0_i32_0 = arith.constant 0 : i32
    return %arg0, %c0_i32 : i32, i32
  }
  func.func @transform_2(%arg0: i32) -> (i32, i32) {
    %c0_i32 = arith.constant 0 : i32
    %c0_i32_0 = arith.constant 0 : i32
    return %arg0, %c0_i32 : i32, i32
  }
}

</mosaic_0001>

<llo_original>
// kernel: tpu_custom_call.1
$region0: #{tpu_custom_call.1}
  #allocation0 [shape = 'u32[]', space=smem, size = 0x4, offset = 0x4, fixed_abs, tag = 'smem constant byte address 0x4 - core index']
  #allocation1 [shape = 'u32[144,128]{1,0:T(1,128)}', space=vmem, size = 0x12000, scoped, tag = 'internal scratch']
  %s0 = inlined_call_operand.hbm [shape: f32[8,512], index: 0, kind: input, shape index: {}, may-alias: {0,2}]
  %s1 = inlined_call_operand.vmem [shape: f32[8,512], index: 1, kind: input, shape index: {}]
  %s2 = inlined_call_operand.hbm [shape: f32[8,512], index: 2, kind: output, shape index: {}, may-alias: {0,2}]
  %s3 = sld [smem:[#allocation0]]
  $region22: #{tpu_custom_call.1} parent=0
    _
  %s5 = ssub.s32 1, %s3
  %s6 = scalar_select 0, %s5, %s3
  $region1: #{tpu_custom_call.1} parent=0
    #allocation2 [shape = 'u8[16384]{0}', space=vmem, size = 0x4000, scoped, tag = 'input window, operand 0, single buffered']
    #allocation3 [shape = 's32[1]{0}', space=sflag, size = 0x4, scoped, tag = 'scoped memory for tpu_custom_call.1']
    #allocation4 [shape = 's32[1]{0}', space=sflag, size = 0x4, scoped, tag = 'scoped memory for tpu_custom_call.1']
    #allocation5 [shape = 'u8[16384]{0}', space=vmem, size = 0x4000, scoped, tag = 'output window, operand 0, single buffered']
    %7 = vsyncpa [#allocation3], 0
    %8 = vsyncpa [#allocation4], 0
    // Predicated region
    $region2: #{tpu_custom_call.1} parent=1 // pred_check
      _
    $region3: #{tpu_custom_call.1} parent=1 // pred_check_branch
      %10 = sbr.rel (0) target = $region5
    $region4: #{tpu_custom_call.1} parent=1 // pred_region
      %s12 = ssub.s32 512, 512
      %13 = vsyncadd [#allocation3], %s12
      %s15 = sshll.u32 [#allocation2], 4
      %s16 = int_to_ptr.vmem [resolvable:$true] %s15
      %18 = dma.hbm_to_vmem [thread:$0]  %s0, 512, %s16, [#allocation3]
    $region5: #{tpu_custom_call.1} parent=1 // pred_fallthru
      _
    // Predicated region
    $region6: #{tpu_custom_call.1} parent=1 // pred_check
      _
    $region7: #{tpu_custom_call.1} parent=1 // pred_check_branch
      %20 = sbr.rel (0) target = $region9
    $region8: #{tpu_custom_call.1} parent=1 // pred_region
      _
    $region9: #{tpu_custom_call.1} parent=1 // pred_fallthru
      _
    // Predicated region
    $region10: #{tpu_custom_call.1} parent=1 // pred_check
      _
    $region11: #{tpu_custom_call.1} parent=1 // pred_check_branch
      %22 = sbr.rel (0) target = $region13
    $region12: #{tpu_custom_call.1} parent=1 // pred_region
      %23 = dma.done [#allocation3], 512
    $region13: #{tpu_custom_call.1} parent=1 // pred_fallthru
      _
    %v24 = vld [vmem:[#allocation2] sm:$0xff]
    %v25 = vld [vmem:[#allocation2 + $0x8] sm:$0xff]
    %v26 = vld [vmem:[#allocation2 + $0x10] sm:$0xff]
    %v27 = vld [vmem:[#allocation2 + $0x18] sm:$0xff]
    %v28 = vld [vmem:[%s1] sm:$0xff]
    %v29 = vld [vmem:[%s1 + $0x8] sm:$0xff]
    %v30 = vld [vmem:[%s1 + $0x10] sm:$0xff]
    %v31 = vld [vmem:[%s1 + $0x18] sm:$0xff]
    %v32 = vmul.f32 %v28, 0.1
    %v33 = vmul.f32 %v29, 0.1
    %v34 = vmul.f32 %v30, 0.1
    %v35 = vmul.f32 %v31, 0.1
    %v36 = vadd.f32 %v24, %v32
    %v37 = vadd.f32 %v25, %v33
    %v38 = vadd.f32 %v26, %v34
    %v39 = vadd.f32 %v27, %v35
    %40 = vst [vmem:[#allocation5] sm:$0xff] %v36
    %41 = vst [vmem:[#allocation5 + $0x8] sm:$0xff] %v37
    %42 = vst [vmem:[#allocation5 + $0x10] sm:$0xff] %v38
    %43 = vst [vmem:[#allocation5 + $0x18] sm:$0xff] %v39
    // Predicated region
    $region14: #{tpu_custom_call.1} parent=1 // pred_check
      _
    $region15: #{tpu_custom_call.1} parent=1 // pred_check_branch
      %45 = sbr.rel (0) target = $region17
    $region16: #{tpu_custom_call.1} parent=1 // pred_region
      %s47 = ssub.s32 512, 512
      %48 = vsyncadd [#allocation4], %s47
      %s50 = sshll.u32 [#allocation5], 4
      %s51 = int_to_ptr.vmem [resolvable:$true] %s50
      %53 = dma.vmem_to_hbm [thread:$0]  %s51, 512, %s2, [#allocation4]
    $region17: #{tpu_custom_call.1} parent=1 // pred_fallthru
      _
    // Predicated region
    $region18: #{tpu_custom_call.1} parent=1 // pred_check
      _
    $region19: #{tpu_custom_call.1} parent=1 // pred_check_branch
      %55 = sbr.rel (0) target = $region21
    $region20: #{tpu_custom_call.1} parent=1 // pred_region
      %56 = dma.done [#allocation4], 512
    $region21: #{tpu_custom_call.1} parent=1 // pred_fallthru
      _
    %57 = vsyncpa [#allocation3], 1
    %58 = vsyncpa [#allocation4], 1

</llo_original>
